<compile_context>
chip_gen: v6e
topology: v6e:2x2x1
jax: 0.10.0
libtpu: 0.0.40
codegen_flags: <defaults>
</compile_context>

<pallas_src>
import jax
import jax.numpy as jnp
from jax.experimental import pallas as pl
from jax.experimental.pallas import tpu as pltpu


def clf_kernel(lm_ref, g_ref, w_lm_ref, w_g_ref, b_ref, out_ref):
    """Fused concat + Linear(lm_dim+gnn_dim, 1) classifier head (one batch tile).

    lm_ref  : [TB, lm_dim]   (BERT pooler_output tile)   VMEM
    g_ref   : [TB, gnn_dim]  (GNN graph_context tile)    VMEM
    w_lm_ref: [1, lm_dim]    lane-dense weight row, f32  VMEM (resident)
    w_g_ref : [1, gnn_dim]   lane-dense weight row, f32  VMEM (resident)
    b_ref   : [1, 1]         bias, f32                   SMEM (scalar)
    out_ref : [TB, 1]        f32
    """
    # Dropout(0.2) is identity in eval mode.
    # TODO(synk): training-mode dropout (pltpu.prng_seed / prng_random_bits)
    # intentionally omitted.
    lm = lm_ref[...].astype(jnp.float32)
    g = g_ref[...].astype(jnp.float32)
    w_lm = w_lm_ref[...]   # [1, lm_dim] broadcasts over rows
    w_g = w_g_ref[...]

    # VPU multiply + XLU lane reduction -- no MXU for an output width of 1.
    acc = jnp.sum(lm * w_lm, axis=-1, keepdims=True)
    acc = acc + jnp.sum(g * w_g, axis=-1, keepdims=True)
    out_ref[...] = (acc + b_ref[0, 0]).astype(out_ref.dtype)


def lm_gnn_clf(lm_context, graph_context, w, b, *, tb=512):
    """Pallas wrapper for the LM_GNN classifier head.

    lm_context   : [B, lm_dim]   (f32 or bf16)
    graph_context: [B, gnn_dim]  (f32 or bf16)
    w            : [lm_dim + gnn_dim, 1]   (transposed nn.Linear weight)
    b            : [1]                     (nn.Linear bias)
    returns      : [B, 1] f32
    """
    B, lm_dim = lm_context.shape
    Bg, gnn_dim = graph_context.shape
    assert Bg == B
    assert w.shape == (lm_dim + gnn_dim, 1)

    # Lane-dense weight rows, widened once here (resident in VMEM across the
    # whole grid, so there is no per-step cast cost either way, but keeping
    # the kernel body dtype-uniform is cleaner).
    w_row = w.reshape(1, lm_dim + gnn_dim).astype(jnp.float32)
    w_lm = w_row[:, :lm_dim]
    w_g = w_row[:, lm_dim:]
    b2 = b.reshape(1, 1).astype(jnp.float32)

    # Batch tiling: TB a multiple of 8, no larger than the (padded) batch.
    tb = max(8, (min(tb, B + 7) // 8) * 8)
    b_pad = pl.cdiv(B, tb) * tb
    if b_pad != B:
        pad = b_pad - B
        lm_context = jnp.pad(lm_context, ((0, pad), (0, 0)))
        graph_context = jnp.pad(graph_context, ((0, pad), (0, 0)))

    bytes_in = (lm_context.size * lm_context.dtype.itemsize
                + graph_context.size * graph_context.dtype.itemsize
                + w_row.size * 4)
    cost = pl.CostEstimate(
        flops=2 * b_pad * (lm_dim + gnn_dim),
        transcendentals=0,
        bytes_accessed=bytes_in + b_pad * 4,
    )

    out = pl.pallas_call(
        clf_kernel,
        out_shape=jax.ShapeDtypeStruct((b_pad, 1), jnp.float32),
        grid=(b_pad // tb,),
        in_specs=[
            pl.BlockSpec((tb, lm_dim), lambda i: (i, 0)),
            pl.BlockSpec((tb, gnn_dim), lambda i: (i, 0)),
            pl.BlockSpec((1, lm_dim), lambda i: (0, 0)),   # resident
            pl.BlockSpec((1, gnn_dim), lambda i: (0, 0)),  # resident
            pl.BlockSpec(memory_space=pltpu.MemorySpace.SMEM),
        ],
        out_specs=pl.BlockSpec((tb, 1), lambda i: (i, 0)),
        compiler_params=pltpu.CompilerParams(
            dimension_semantics=("parallel",),
        ),
        cost_estimate=cost,
    )(lm_context, graph_context, w_lm, w_g, b2)

    return out[:B]


if __name__ == "__main__":
    # Small, deterministic shapes consistent with the module's forward:
    #   B = 8 sequences/graphs, lm_dim = 32 (BERT hidden), gnn_dim = 32.
    B, lm_dim, gnn_dim = 8, 32, 32

    key = jax.random.PRNGKey(0)
    k_lm, k_g, k_w, k_b = jax.random.split(key, 4)

    # Stand-ins for the external submodule outputs:
    # TODO(synk): BertModel and GNN forwards are external/abstract (GNN raises
    # NotImplementedError); their pooled outputs are synthesized here.
    lm_context = jax.random.normal(k_lm, (B, lm_dim), dtype=jnp.float32)
    graph_context = jax.random.normal(k_g, (B, gnn_dim), dtype=jnp.float32)

    # nn.Linear(lm_dim + gnn_dim, 1) parameters, PyTorch-style uniform init.
    fan_in = lm_dim + gnn_dim
    bound = 1.0 / (fan_in ** 0.5)
    w = jax.random.uniform(k_w, (fan_in, 1), minval=-bound, maxval=bound,
                           dtype=jnp.float32)
    b = jax.random.uniform(k_b, (1,), minval=-bound, maxval=bound,
                           dtype=jnp.float32)

    out = lm_gnn_clf(lm_context, graph_context, w, b)
    out = jax.block_until_ready(out)

    # Reference check (plain JAX, eval-mode dropout == identity).
    ref = jnp.concatenate((lm_context, graph_context), axis=1) @ w + b
    assert out.shape == (B, 1)
    assert jnp.allclose(out, ref, atol=1e-5, rtol=1e-5)

    print("KERNEL_OK")
</pallas_src>

<mosaic_0001>
module attributes {stable_mosaic.version = 11 : i64} {
  func.func @clf_kernel(%arg0: i32, %arg1: memref<8x32xf32, #tpu.memory_space<vmem>>, %arg2: memref<8x32xf32, #tpu.memory_space<vmem>>, %arg3: memref<1x32xf32, #tpu.memory_space<vmem>>, %arg4: memref<1x32xf32, #tpu.memory_space<vmem>>, %arg5: memref<1x1xf32, #tpu.memory_space<smem>>, %arg6: memref<8x1xf32, #tpu.memory_space<vmem>>) attributes {dimension_semantics = [#tpu.dimension_semantics<parallel>], iteration_bounds = array<i64: 1>, scalar_prefetch = 0 : i64, scratch_operands = 0 : i64, tpu.core_type = #tpu.core_type<tc>, window_params = [{transform_indices = @transform_0, window_bounds = array<i64: 8, 32>}, {transform_indices = @transform_1, window_bounds = array<i64: 8, 32>}, {pipeline_mode = #tpu.pipeline_mode<synchronous>, transform_indices = @transform_2, window_bounds = array<i64: 1, 32>}, {pipeline_mode = #tpu.pipeline_mode<synchronous>, transform_indices = @transform_3, window_bounds = array<i64: 1, 32>}, {transform_indices = @transform_4, window_bounds = array<i64: 1, 1>}, {transform_indices = @transform_5, window_bounds = array<i64: 8, 1>}]} {
    %c0 = arith.constant 0 : index
    %c0_0 = arith.constant 0 : index
    %0 = vector.load %arg1[%c0, %c0_0] : memref<8x32xf32, #tpu.memory_space<vmem>>, vector<8x32xf32>
    %c0_1 = arith.constant 0 : index
    %c0_2 = arith.constant 0 : index
    %1 = vector.load %arg2[%c0_1, %c0_2] : memref<8x32xf32, #tpu.memory_space<vmem>>, vector<8x32xf32>
    %c0_3 = arith.constant 0 : index
    %c0_4 = arith.constant 0 : index
    %2 = vector.load %arg3[%c0_3, %c0_4] : memref<1x32xf32, #tpu.memory_space<vmem>>, vector<1x32xf32>
    %c0_5 = arith.constant 0 : index
    %c0_6 = arith.constant 0 : index
    %3 = vector.load %arg4[%c0_5, %c0_6] : memref<1x32xf32, #tpu.memory_space<vmem>>, vector<1x32xf32>
    %4 = vector.broadcast %2 : vector<1x32xf32> to vector<8x32xf32>
    %5 = arith.mulf %0, %4 : vector<8x32xf32>
    %cst = arith.constant dense<0.000000e+00> : vector<8xf32>
    %6 = vector.multi_reduction <add>, %5, %cst [1] : vector<8x32xf32> to vector<8xf32>
    %7 = vector.shape_cast %6 : vector<8xf32> to vector<8x1xf32>
    %8 = vector.broadcast %3 : vector<1x32xf32> to vector<8x32xf32>
    %9 = arith.mulf %1, %8 : vector<8x32xf32>
    %cst_7 = arith.constant dense<0.000000e+00> : vector<8xf32>
    %10 = vector.multi_reduction <add>, %9, %cst_7 [1] : vector<8x32xf32> to vector<8xf32>
    %11 = vector.shape_cast %10 : vector<8xf32> to vector<8x1xf32>
    %12 = arith.addf %7, %11 : vector<8x1xf32>
    %c0_8 = arith.constant 0 : index
    %c0_9 = arith.constant 0 : index
    %13 = memref.load %arg5[%c0_8, %c0_9] : memref<1x1xf32, #tpu.memory_space<smem>>
    %14 = vector.broadcast %13 : f32 to vector<8x1xf32>
    %15 = arith.addf %12, %14 : vector<8x1xf32>
    %c0_10 = arith.constant 0 : index
    %c0_11 = arith.constant 0 : index
    %16 = vector.load %arg6[%c0_10, %c0_11] : memref<8x1xf32, #tpu.memory_space<vmem>>, vector<8x1xf32>
    tpu.vector_store %arg6[%c0_10, %c0_11], %15 {strides = array<i32>} : memref<8x1xf32, #tpu.memory_space<vmem>>, vector<8x1xf32>,
    return
  }
  func.func @transform_0(%arg0: i32) -> (i32, i32) {
    %c0_i32 = arith.constant 0 : i32
    %c0_i32_0 = arith.constant 0 : i32
    return %arg0, %c0_i32 : i32, i32
  }
  func.func @transform_1(%arg0: i32) -> (i32, i32) {
    %c0_i32 = arith.constant 0 : i32
    %c0_i32_0 = arith.constant 0 : i32
    return %arg0, %c0_i32 : i32, i32
  }
  func.func @transform_2(%arg0: i32) -> (i32, i32) {
    %c0_i32 = arith.constant 0 : i32
    %c0_i32_0 = arith.constant 0 : i32
    %c0_i32_1 = arith.constant 0 : i32
    return %c0_i32, %c0_i32_0 : i32, i32
  }
  func.func @transform_3(%arg0: i32) -> (i32, i32) {
    %c0_i32 = arith.constant 0 : i32
    %c0_i32_0 = arith.constant 0 : i32
    %c0_i32_1 = arith.constant 0 : i32
    return %c0_i32, %c0_i32_0 : i32, i32
  }
  func.func @transform_4(%arg0: i32) -> (i32, i32) {
    %c0_i32 = arith.constant 0 : i32
    %c0_i32_0 = arith.constant 0 : i32
    %c0_i32_1 = arith.constant 0 : i32
    return %c0_i32, %c0_i32_0 : i32, i32
  }
  func.func @transform_5(%arg0: i32) -> (i32, i32) {
    %c0_i32 = arith.constant 0 : i32
    %c0_i32_0 = arith.constant 0 : i32
    return %arg0, %c0_i32 : i32, i32
  }
}

</mosaic_0001>

<llo_original>
// kernel: tpu_custom_call.1
$region0: #{tpu_custom_call.1}
  #allocation0 [shape = 'u32[]', space=smem, size = 0x4, offset = 0x4, fixed_abs, tag = 'smem constant byte address 0x4 - core index']
  #allocation1 [shape = 'u32[144,128]{1,0:T(1,128)}', space=vmem, size = 0x12000, scoped, tag = 'internal scratch']
  #allocation2 [shape = 'f32[1,1]{1,0:T(1,128)S(6)}', space=smem, size = 0x200, scoped, tag = 'scoped memory for tpu_custom_call.1']
  %s0 = inlined_call_operand.hbm [shape: f32[8,32], index: 0, kind: input, shape index: {}]
  %s1 = inlined_call_operand.hbm [shape: f32[8,32], index: 1, kind: input, shape index: {}]
  %s2 = inlined_call_operand.vmem [shape: f32[1,32], index: 2, kind: input, shape index: {}]
  %s3 = inlined_call_operand.vmem [shape: f32[1,32], index: 3, kind: input, shape index: {}]
  %s4 = inlined_call_operand.<no memory space> [shape: f32[1,1], index: 4, kind: input, shape index: {}]
  %s5 = inlined_call_operand.vmem [shape: f32[8,1], index: 5, kind: output, shape index: {}]
  %s6 = sld [smem:[#allocation0]]
  $region38: #{tpu_custom_call.1} parent=0
    _
  %s8 = ssub.s32 1, %s6
  %s9 = scalar_select 0, %s8, %s6
  %10 = sst [smem:[#allocation2]] %s4
  $region1: #{tpu_custom_call.1} parent=0
    #allocation3 [shape = 'u8[4096]{0}', space=vmem, size = 0x1000, scoped, tag = 'input window, operand 0, single buffered']
    #allocation4 [shape = 's32[1]{0}', space=sflag, size = 0x4, scoped, tag = 'scoped memory for tpu_custom_call.1']
    #allocation5 [shape = 'u8[4096]{0}', space=vmem, size = 0x1000, scoped, tag = 'input window, operand 1, single buffered']
    #allocation6 [shape = 's32[1]{0}', space=sflag, size = 0x4, scoped, tag = 'scoped memory for tpu_custom_call.1']
    %11 = vsyncpa [#allocation4], 0
    %12 = vsyncpa [#allocation6], 0
    // Predicated region
    $region2: #{tpu_custom_call.1} parent=1 // pred_check
      _
    $region3: #{tpu_custom_call.1} parent=1 // pred_check_branch
      %14 = sbr.rel (0) target = $region5
    $region4: #{tpu_custom_call.1} parent=1 // pred_region
      %s16 = ssub.s32 128, 128
      %17 = vsyncadd [#allocation4], %s16
      %s19 = sshll.u32 [#allocation3], 4
      %s20 = int_to_ptr.vmem [resolvable:$true] %s19
      %22 = dma.hbm_to_vmem [thread:$0]  %s0, 128, %s20, [#allocation4]
    $region5: #{tpu_custom_call.1} parent=1 // pred_fallthru
      _
    // Predicated region
    $region6: #{tpu_custom_call.1} parent=1 // pred_check
      _
    $region7: #{tpu_custom_call.1} parent=1 // pred_check_branch
      %24 = sbr.rel (0) target = $region9
    $region8: #{tpu_custom_call.1} parent=1 // pred_region
      %s26 = ssub.s32 128, 128
      %27 = vsyncadd [#allocation6], %s26
      %s29 = sshll.u32 [#allocation5], 4
      %s30 = int_to_ptr.vmem [resolvable:$true] %s29
      %32 = dma.hbm_to_vmem [thread:$0]  %s1, 128, %s30, [#allocation6]
    $region9: #{tpu_custom_call.1} parent=1 // pred_fallthru
      _
    // Predicated region
    $region10: #{tpu_custom_call.1} parent=1 // pred_check
      _
    $region11: #{tpu_custom_call.1} parent=1 // pred_check_branch
      %34 = sbr.rel (0) target = $region13
    $region12: #{tpu_custom_call.1} parent=1 // pred_region
      _
    $region13: #{tpu_custom_call.1} parent=1 // pred_fallthru
      _
    // Predicated region
    $region14: #{tpu_custom_call.1} parent=1 // pred_check
      _
    $region15: #{tpu_custom_call.1} parent=1 // pred_check_branch
      %36 = sbr.rel (0) target = $region17
    $region16: #{tpu_custom_call.1} parent=1 // pred_region
      _
    $region17: #{tpu_custom_call.1} parent=1 // pred_fallthru
      _
    // Predicated region
    $region18: #{tpu_custom_call.1} parent=1 // pred_check
      _
    $region19: #{tpu_custom_call.1} parent=1 // pred_check_branch
      %38 = sbr.rel (0) target = $region21
    $region20: #{tpu_custom_call.1} parent=1 // pred_region
      _
    $region21: #{tpu_custom_call.1} parent=1 // pred_fallthru
      _
    // Predicated region
    $region22: #{tpu_custom_call.1} parent=1 // pred_check
      _
    $region23: #{tpu_custom_call.1} parent=1 // pred_check_branch
      %40 = sbr.rel (0) target = $region25
    $region24: #{tpu_custom_call.1} parent=1 // pred_region
      %41 = dma.done [#allocation4], 128
    $region25: #{tpu_custom_call.1} parent=1 // pred_fallthru
      _
    // Predicated region
    $region26: #{tpu_custom_call.1} parent=1 // pred_check
      _
    $region27: #{tpu_custom_call.1} parent=1 // pred_check_branch
      %43 = sbr.rel (0) target = $region29
    $region28: #{tpu_custom_call.1} parent=1 // pred_region
      %44 = dma.done [#allocation6], 128
    $region29: #{tpu_custom_call.1} parent=1 // pred_fallthru
      _
    %v45 = vld [vmem:[#allocation3] sm:$0xff]
    %v46 = vld [vmem:[#allocation5] sm:$0xff]
    %v47 = vld [vmem:[%s2] sm:$0x1]
    %v48 = vld [vmem:[%s3] sm:$0x1]
    %v50 = vlaneseq
    %v51 = vshrl.u32 %v50, 7
    %v52 = vsub.s32 0, %v51
    %v53 = vrot.slane %v47, %v52
    %v55 = vmul.f32 %v45, %v53
    %vm56 = vcmask 261120
    %v57 = vsel %vm56, %v55, 0.0
    %58 = vadd.xlane.f32.xlu0 %v57
    %v59 = vpop.xlane.xlu0 %58
    %v61 = vlaneseq
    %v62 = vshrl.u32 %v61, 7
    %v63 = vsub.s32 0, %v62
    %v64 = vrot.slane %v48, %v63
    %v66 = vmul.f32 %v46, %v64
    %v67 = vsel %vm56, %v66, 0.0
    %68 = vadd.xlane.f32.xlu0 %v67
    %v69 = vpop.xlane.xlu0 %68
    %v70 = vadd.f32 %v59, %v69
    %s71 = sld [smem:[#allocation2]]
    %v72 = vstv %s71
    %v73 = vadd.f32 %v70, %v72
    %vm74 = vcmask 7168
    %75 = vst.msk [vmem:[%s5] sm:$0xff] %vm74, %v73
    // Predicated region
    $region30: #{tpu_custom_call.1} parent=1 // pred_check
      _
    $region31: #{tpu_custom_call.1} parent=1 // pred_check_branch
      %77 = sbr.rel (0) target = $region33
    $region32: #{tpu_custom_call.1} parent=1 // pred_region
      _
    $region33: #{tpu_custom_call.1} parent=1 // pred_fallthru
      _
    // Predicated region
    $region34: #{tpu_custom_call.1} parent=1 // pred_check
      _
    $region35: #{tpu_custom_call.1} parent=1 // pred_check_branch
      %79 = sbr.rel (0) target = $region37
    $region36: #{tpu_custom_call.1} parent=1 // pred_region
      _
    $region37: #{tpu_custom_call.1} parent=1 // pred_fallthru
      _
    %80 = vsyncpa [#allocation4], 1
    %81 = vsyncpa [#allocation6], 1

</llo_original>
